<compile_context>
chip_gen: v7x
topology: tpu7x:2x2x1
jax: 0.10.0
libtpu: 0.0.40
codegen_flags: <defaults>
</compile_context>

<pallas_src>
import jax
import jax.numpy as jnp
from jax.experimental import pallas as pl
from jax.experimental.pallas import tpu as pltpu


# ---------------------------------------------------------------------------
# Pass 1: per-node precompute (hoisted out of the dst-tile loop).
# ---------------------------------------------------------------------------
def _precompute_kernel(h_ref, att_ref, wn_ref, bn_ref, wam_ref, h1_ref, t_ref):
    h1 = jnp.dot(h_ref[...], wn_ref[...],
                 preferred_element_type=jnp.float32) + bn_ref[...]
    h1_ref[...] = h1
    t_ref[...] = jnp.dot(att_ref[...] * h1, wam_ref[...],
                         preferred_element_type=jnp.float32)


# ---------------------------------------------------------------------------
# Pass 2: per-destination-tile aggregation, K-tiled over source nodes.
# ---------------------------------------------------------------------------
def _aggregate_kernel(adj_ref, t_ref, h1_ref, att_ref, wah_ref, ba_ref,
                      out_ref, acc_ref, deg_ref):
    k = pl.program_id(1)

    @pl.when(k == 0)
    def _():
        acc_ref[...] = jnp.zeros_like(acc_ref)
        deg_ref[...] = jnp.zeros_like(deg_ref)

    # adj may arrive as bf16 (0/1 is exact); promote once per tile so the
    # accumulation matches an f32 adjacency bit-for-bit.
    a = adj_ref[...].astype(jnp.float32)                         # [TN, TK]
    acc_ref[...] += jnp.dot(a, t_ref[...],
                            preferred_element_type=jnp.float32)  # [TN, D_out]
    deg_ref[...] += jnp.sum(a, axis=1, keepdims=True)            # [TN, 1]

    @pl.when(k == pl.num_programs(1) - 1)
    def _():
        h1_dst = h1_ref[...]                                     # [TN, D_in]
        z = (acc_ref[...]
             + jnp.dot(h1_dst, wah_ref[...], preferred_element_type=jnp.float32)
             + ba_ref[...])
        h2 = att_ref[...] * jnp.maximum(z, 0.0)
        # DGL: zero-in-degree nodes keep their apply_nodes output h1.
        out_ref[...] = jnp.where(deg_ref[...] > 0.0, h2, h1_dst)


def fact_gcn_forward(h, att, adj, params, *, tile_n=512, tile_k=512, tile_m=512):
    """One FactGCNLayer forward on a dense graph (adj[i, j]=1 iff edge j->i)."""
    N, D_in = h.shape
    wn, bn, wam, wah, ba = params
    D_out = wam.shape[1]
    assert D_in == D_out, "DGL zero-in-degree semantics require in_dims == out_dims"

    tile_n = min(tile_n, N)
    tile_k = min(tile_k, N)
    tile_m = min(tile_m, N)
    assert N % tile_n == 0 and N % tile_k == 0 and N % tile_m == 0

    adj_bytes = adj.dtype.itemsize

    # ---- pass 1: h1 = node_fc(h), t = (att * h1) @ W_msg  (once, all nodes)
    h1, t = pl.pallas_call(
        _precompute_kernel,
        out_shape=(jax.ShapeDtypeStruct((N, D_in), jnp.float32),
                   jax.ShapeDtypeStruct((N, D_out), jnp.float32)),
        grid=(N // tile_m,),
        in_specs=[
            pl.BlockSpec((tile_m, D_in), lambda i: (i, 0)),   # h
            pl.BlockSpec((tile_m, 1), lambda i: (i, 0)),      # att
            pl.BlockSpec((D_in, D_in), lambda i: (0, 0)),     # W_node
            pl.BlockSpec((1, D_in), lambda i: (0, 0)),        # b_node
            pl.BlockSpec((D_in, D_out), lambda i: (0, 0)),    # W_apply (msg half)
        ],
        out_specs=[
            pl.BlockSpec((tile_m, D_in), lambda i: (i, 0)),   # h1
            pl.BlockSpec((tile_m, D_out), lambda i: (i, 0)),  # t
        ],
        compiler_params=pltpu.CompilerParams(
            dimension_semantics=("parallel",)),
        cost_estimate=pl.CostEstimate(
            flops=2 * N * D_in * D_in + 2 * N * D_in * D_out,
            transcendentals=0,
            bytes_accessed=4 * (N * D_in            # h in
                                + N * D_in          # h1 out
                                + N * D_out         # t out
                                + D_in * D_in + D_in * D_out + N)),
    )(h, att, wn, bn, wam)

    # ---- pass 2: K-tiled aggregation over source nodes
    out = pl.pallas_call(
        _aggregate_kernel,
        out_shape=jax.ShapeDtypeStruct((N, D_out), jnp.float32),
        grid=(N // tile_n, N // tile_k),
        in_specs=[
            pl.BlockSpec((tile_n, tile_k), lambda i, k: (i, k)),  # adj dst/src tile
            pl.BlockSpec((tile_k, D_out), lambda i, k: (k, 0)),   # t (src slice)
            pl.BlockSpec((tile_n, D_in), lambda i, k: (i, 0)),    # h1 (dst slice)
            pl.BlockSpec((tile_n, 1), lambda i, k: (i, 0)),       # att (dst slice)
            pl.BlockSpec((D_in, D_out), lambda i, k: (0, 0)),     # W_apply (h half)
            pl.BlockSpec((1, D_out), lambda i, k: (0, 0)),        # b_apply
        ],
        out_specs=pl.BlockSpec((tile_n, D_out), lambda i, k: (i, 0)),
        scratch_shapes=[
            pltpu.VMEM((tile_n, D_out), jnp.float32),   # message accumulator
            pltpu.VMEM((tile_n, 1), jnp.float32),       # in-degree accumulator
        ],
        compiler_params=pltpu.CompilerParams(
            dimension_semantics=("parallel", "arbitrary")),
        cost_estimate=pl.CostEstimate(
            flops=2 * N * N * D_out + 2 * N * D_in * D_out,
            transcendentals=0,
            bytes_accessed=(adj_bytes * N * N                       # adj once
                            + 4 * (N // tile_n) * N * D_out         # t re-reads
                            + 4 * N * (D_in + D_out)                # h1 in, out
                            + 4 * (D_in * D_out + D_out + N))),
    )(adj, t, h1, att, wah, ba)
    return out


def fact_gcn_reference(h, att, adj, params):
    """Pure-JAX reference mirroring the DGL/PyTorch semantics."""
    wn, bn, wam, wah, ba = params
    adj = adj.astype(jnp.float32)
    h1 = h @ wn + bn
    msg = adj @ (att * h1)
    z = msg @ wam + h1 @ wah + ba
    h2 = att * jnp.maximum(z, 0.0)
    deg = jnp.sum(adj, axis=1, keepdims=True)
    return jnp.where(deg > 0.0, h2, h1)


def init_params(key, in_dims, out_dims):
    """Deterministic nn.Linear-style init: U(-1/sqrt(fan_in), 1/sqrt(fan_in))."""
    k1, k2, k3, k4 = jax.random.split(key, 4)
    # node_fc: Linear(in_dims, in_dims). Stored as [in, out] so y = x @ W + b.
    kn = 1.0 / jnp.sqrt(in_dims)
    wn = jax.random.uniform(k1, (in_dims, in_dims), jnp.float32, -kn, kn)
    bn = jax.random.uniform(k2, (1, in_dims), jnp.float32, -kn, kn)
    # apply_fc: Linear(2*in_dims, out_dims); cat([msg, h]) @ W == msg@W_msg + h@W_h.
    ka = 1.0 / jnp.sqrt(2 * in_dims)
    wa = jax.random.uniform(k3, (2 * in_dims, out_dims), jnp.float32, -ka, ka)
    ba = jax.random.uniform(k4, (1, out_dims), jnp.float32, -ka, ka)
    wam, wah = wa[:in_dims], wa[in_dims:]
    return wn, bn, wam, wah, ba


if __name__ == "__main__":
    # Small graph: 256 nodes, hidden 128 (lane-dense feature dim).
    N, D_IN, D_OUT = 256, 128, 128

    key = jax.random.PRNGKey(0)
    kp, kh, ka, kadj = jax.random.split(key, 4)

    params = init_params(kp, D_IN, D_OUT)
    h = jax.random.normal(kh, (N, D_IN), jnp.float32)
    att = jax.random.uniform(ka, (N, 1), jnp.float32)
    # Adjacency stored in bf16 (0/1 exact) -> half the HBM bytes for the N^2 stream.
    adj = (jax.random.uniform(kadj, (N, N)) < 0.1).astype(jnp.bfloat16)
    # Force a few zero-in-degree rows to exercise the DGL fallback path.
    adj = adj.at[:4].set(jnp.zeros((4, N), jnp.bfloat16))

    out = fact_gcn_forward(h, att, adj, params,
                           tile_n=128, tile_k=128, tile_m=128)
    out = jax.block_until_ready(out)

    ref = fact_gcn_reference(h, att, adj, params)
    assert out.shape == (N, D_OUT)
    assert jnp.allclose(out, ref, rtol=2e-3, atol=2e-3), "mismatch vs reference"

    print("KERNEL_OK")
</pallas_src>

<mosaic_0001>
module attributes {stable_mosaic.version = 11 : i64} {
  func.func @_precompute_kernel(%arg0: i32, %arg1: memref<128x128xf32, #tpu.memory_space<vmem>>, %arg2: memref<128x1xf32, #tpu.memory_space<vmem>>, %arg3: memref<128x128xf32, #tpu.memory_space<vmem>>, %arg4: memref<1x128xf32, #tpu.memory_space<vmem>>, %arg5: memref<128x128xf32, #tpu.memory_space<vmem>>, %arg6: memref<128x128xf32, #tpu.memory_space<vmem>>, %arg7: memref<128x128xf32, #tpu.memory_space<vmem>>) attributes {dimension_semantics = [#tpu.dimension_semantics<parallel>], iteration_bounds = array<i64: 2>, scalar_prefetch = 0 : i64, scratch_operands = 0 : i64, tpu.core_type = #tpu.core_type<tc>, window_params = [{transform_indices = @transform_0, window_bounds = array<i64: 128, 128>}, {transform_indices = @transform_1, window_bounds = array<i64: 128, 1>}, {pipeline_mode = #tpu.pipeline_mode<synchronous>, transform_indices = @transform_2, window_bounds = array<i64: 128, 128>}, {pipeline_mode = #tpu.pipeline_mode<synchronous>, transform_indices = @transform_3, window_bounds = array<i64: 1, 128>}, {pipeline_mode = #tpu.pipeline_mode<synchronous>, transform_indices = @transform_4, window_bounds = array<i64: 128, 128>}, {transform_indices = @transform_5, window_bounds = array<i64: 128, 128>}, {transform_indices = @transform_6, window_bounds = array<i64: 128, 128>}]} {
    %c0 = arith.constant 0 : index
    %c0_0 = arith.constant 0 : index
    %0 = vector.load %arg1[%c0, %c0_0] : memref<128x128xf32, #tpu.memory_space<vmem>>, vector<128x128xf32>
    %c0_1 = arith.constant 0 : index
    %c0_2 = arith.constant 0 : index
    %1 = vector.load %arg3[%c0_1, %c0_2] : memref<128x128xf32, #tpu.memory_space<vmem>>, vector<128x128xf32>
    %cst = arith.constant dense<0.000000e+00> : vector<128x128xf32>
    %2 = tpu.matmul %0, %1, %cst {dimension_numbers = #tpu.dot_dimension_numbers<[1], [0], [0], [1], [0, 0, 1, 1], [], []>} : vector<128x128xf32>, vector<128x128xf32>, vector<128x128xf32> -> vector<128x128xf32>
    %c0_3 = arith.constant 0 : index
    %c0_4 = arith.constant 0 : index
    %3 = vector.load %arg4[%c0_3, %c0_4] : memref<1x128xf32, #tpu.memory_space<vmem>>, vector<1x128xf32>
    %4 = vector.broadcast %3 : vector<1x128xf32> to vector<128x128xf32>
    %5 = arith.addf %2, %4 : vector<128x128xf32>
    %c0_5 = arith.constant 0 : index
    %c0_6 = arith.constant 0 : index
    %6 = vector.load %arg6[%c0_5, %c0_6] : memref<128x128xf32, #tpu.memory_space<vmem>>, vector<128x128xf32>
    tpu.vector_store %arg6[%c0_5, %c0_6], %5 {strides = array<i32>} : memref<128x128xf32, #tpu.memory_space<vmem>>, vector<128x128xf32>,
    %c0_7 = arith.constant 0 : index
    %c0_8 = arith.constant 0 : index
    %7 = vector.load %arg2[%c0_7, %c0_8] : memref<128x1xf32, #tpu.memory_space<vmem>>, vector<128x1xf32>
    %8 = vector.broadcast %7 : vector<128x1xf32> to vector<128x128xf32>
    %9 = arith.mulf %8, %5 : vector<128x128xf32>
    %c0_9 = arith.constant 0 : index
    %c0_10 = arith.constant 0 : index
    %10 = vector.load %arg5[%c0_9, %c0_10] : memref<128x128xf32, #tpu.memory_space<vmem>>, vector<128x128xf32>
    %cst_11 = arith.constant dense<0.000000e+00> : vector<128x128xf32>
    %11 = tpu.matmul %9, %10, %cst_11 {dimension_numbers = #tpu.dot_dimension_numbers<[1], [0], [0], [1], [0, 0, 1, 1], [], []>} : vector<128x128xf32>, vector<128x128xf32>, vector<128x128xf32> -> vector<128x128xf32>
    %c0_12 = arith.constant 0 : index
    %c0_13 = arith.constant 0 : index
    %12 = vector.load %arg7[%c0_12, %c0_13] : memref<128x128xf32, #tpu.memory_space<vmem>>, vector<128x128xf32>
    tpu.vector_store %arg7[%c0_12, %c0_13], %11 {strides = array<i32>} : memref<128x128xf32, #tpu.memory_space<vmem>>, vector<128x128xf32>,
    return
  }
  func.func @transform_0(%arg0: i32) -> (i32, i32) {
    %c0_i32 = arith.constant 0 : i32
    %c0_i32_0 = arith.constant 0 : i32
    return %arg0, %c0_i32 : i32, i32
  }
  func.func @transform_1(%arg0: i32) -> (i32, i32) {
    %c0_i32 = arith.constant 0 : i32
    %c0_i32_0 = arith.constant 0 : i32
    return %arg0, %c0_i32 : i32, i32
  }
  func.func @transform_2(%arg0: i32) -> (i32, i32) {
    %c0_i32 = arith.constant 0 : i32
    %c0_i32_0 = arith.constant 0 : i32
    %c0_i32_1 = arith.constant 0 : i32
    return %c0_i32, %c0_i32_0 : i32, i32
  }
  func.func @transform_3(%arg0: i32) -> (i32, i32) {
    %c0_i32 = arith.constant 0 : i32
    %c0_i32_0 = arith.constant 0 : i32
    %c0_i32_1 = arith.constant 0 : i32
    return %c0_i32, %c0_i32_0 : i32, i32
  }
  func.func @transform_4(%arg0: i32) -> (i32, i32) {
    %c0_i32 = arith.constant 0 : i32
    %c0_i32_0 = arith.constant 0 : i32
    %c0_i32_1 = arith.constant 0 : i32
    return %c0_i32, %c0_i32_0 : i32, i32
  }
  func.func @transform_5(%arg0: i32) -> (i32, i32) {
    %c0_i32 = arith.constant 0 : i32
    %c0_i32_0 = arith.constant 0 : i32
    return %arg0, %c0_i32 : i32, i32
  }
  func.func @transform_6(%arg0: i32) -> (i32, i32) {
    %c0_i32 = arith.constant 0 : i32
    %c0_i32_0 = arith.constant 0 : i32
    return %arg0, %c0_i32 : i32, i32
  }
}

</mosaic_0001>

<llo_original>
// kernel: tpu_custom_call.1
$region0: #{tpu_custom_call.1}
  #allocation0 [shape = 'u32[]', space=smem, size = 0x4, offset = 0x4, fixed_abs, tag = 'smem constant byte address 0x4 - core index']
  #allocation1 [shape = 'u32[144,128]{1,0:T(1,128)}', space=vmem, size = 0x12000, scoped, tag = 'internal scratch']
  %s0 = inlined_call_operand.vmem [shape: f32[256,128], index: 0, kind: input, shape index: {}]
  %s1 = inlined_call_operand.vmem [shape: f32[256,1], index: 1, kind: input, shape index: {}]
  %s2 = inlined_call_operand.hbm [shape: f32[128,128], index: 2, kind: input, shape index: {}]
  %s3 = inlined_call_operand.vmem [shape: f32[1,128], index: 3, kind: input, shape index: {}]
  %s4 = inlined_call_operand.hbm [shape: f32[128,128], index: 4, kind: input, shape index: {}]
  %s5 = inlined_call_operand.hbm [shape: f32[256,128], index: 5, kind: output, shape index: {0}]
  %s6 = inlined_call_operand.hbm [shape: f32[256,128], index: 6, kind: output, shape index: {1}]
  %7 = xla_tuple %s5, %s6
  %s8 = sld [smem:[#allocation0]]
  $region69: #{tpu_custom_call.1} parent=0
    _
  %s10 = ssub.s32 1, %s8
  %s11 = scalar_select 0, %s10, %s8
  $region1: #{tpu_custom_call.1} parent=0
    #allocation2 [shape = 'u8[65536]{0}', space=vmem, size = 0x10000, scoped, tag = 'input window, operand 2, single buffered']
    #allocation3 [shape = 's32[2]{0}', space=sflag, size = 0x8, scoped, tag = 'scoped memory for tpu_custom_call.1']
    #allocation4 [shape = 's32[2]{0}', space=sflag, size = 0x8, scoped, tag = 'scoped memory for tpu_custom_call.1']
    #allocation5 [shape = 'u8[65536]{0}', space=vmem, size = 0x10000, scoped, tag = 'input window, operand 4, single buffered']
    #allocation6 [shape = 's32[1]{0}', space=sflag, size = 0x4, scoped, tag = 'scoped memory for tpu_custom_call.1']
    #allocation7 [shape = 'u8[131072]{0}', space=vmem, size = 0x20000, scoped, tag = 'output window, operand 0']
    #allocation8 [shape = 'u8[131072]{0}', space=vmem, size = 0x20000, scoped, tag = 'output window, operand 1']
    #allocation9 [shape = 's32[2]{0}', space=sflag, size = 0x8, scoped, tag = 'scoped memory for tpu_custom_call.1']
    %12 = vsyncpa [#allocation3], 0
    %13 = vsyncpa [#allocation6], 0
    %14 = vsyncpa [#allocation4], 0
    %s15 = scalar_lea.sflag [#allocation4], 1
    %16 = vsyncpa %s15, 0
    %17 = vsyncpa [#allocation9], 0
    %s18 = scalar_lea.sflag [#allocation9], 1
    %19 = vsyncpa %s18, 0
    loop: start=0, step=1, limit=4
    $region2: #{tpu_custom_call.1} parent=1 // loop_pre_header
      _
    $region3: #{tpu_custom_call.1} parent=1 // loop_header
      %s21 = sphi 0, %s25
      %p22 = scmp.ge.s32.totalorder %s21, 4
      %s31 = sphi 0, %s33
      %s34 = sphi 0, %s31
      %s35 = sphi 0, %s34
      %s51 = sphi 0, %s35
      %s57 = sphi 0, %s59
      %s60 = sphi 0, %s57
      %s61 = sphi 0, %s60
      %s77 = sphi 0, %s61
      %s81 = sphi 0, %s81
      %s83 = sphi 0, %s81
      %s84 = sphi 0, %s83
      %s98 = sphi 0, %s84
      %s102 = sphi 0, %s102
      %s104 = sphi 0, %s102
      %s105 = sphi 0, %s104
      %s119 = sphi 0, %s105
      %s123 = sphi 0, %s123
      %s125 = sphi 0, %s123
      %s126 = sphi 0, %s125
      %s140 = sphi 0, %s126
      %s146 = sphi 0, %s148
      %s149 = sphi 0, %s146
      %s150 = sphi 0, %s149
      %s166 = sphi 0, %s150
      %s172 = sphi 0, %s174
      %s175 = sphi 0, %s172
      %s176 = sphi 0, %s175
      %s192 = sphi 0, %s176
    $region4: #{tpu_custom_call.1} parent=1 // loop_header_branch
      %24 = sbr.rel (%p22) target = $region8
    $region5: #{tpu_custom_call.1} parent=1 // loop_body
      %s26 = ssub.s32 %s21, 1
      %s27 = ssub.s32 %s21, 2
      %s28 = sadd.s32 %s21, 1
      %s29 = ssub.s32 %s21, %s28
      %p30 = scmp.eq.s32.totalorder %s29, 0
      %s32 = sadd.s32 %s31, 1
      %s33 = scalar_select %p30, %s31, %s32
      %p36 = pneg %p30
      %p37 = scmp.eq.s32.totalorder %s21, 1
      %p38 = por %p36, %p37
      %p39 = scmp.ne.s32.totalorder %s31, %s34
      %p40 = scmp.eq.s32.totalorder %s21, 0
      %p41 = por %p39, %p40
      %p42 = scmp.ne.s32.totalorder %s31, %s34
      %p43 = scmp.eq.s32.totalorder %s26, 1
      %p44 = por %p42, %p43
      %p45 = scmp.ne.s32.totalorder %s34, %s35
      %p46 = scmp.eq.s32.totalorder %s26, 0
      %p47 = por %p45, %p46
      %p48 = scmp.ne.s32.totalorder %s34, %s35
      %p49 = scmp.eq.s32.totalorder %s27, 1
      %p50 = por %p48, %p49
      %p52 = scmp.ne.s32.totalorder %s35, %s51
      %p53 = scmp.eq.s32.totalorder %s27, 0
      %p54 = por %p52, %p53
      %s55 = ssub.s32 %s21, %s28
      %p56 = scmp.eq.s32.totalorder %s55, 0
      %s58 = sadd.s32 %s57, 1
      %s59 = scalar_select %p56, %s57, %s58
      %p62 = pneg %p56
      %p63 = scmp.eq.s32.totalorder %s21, 1
      %p64 = por %p62, %p63
      %p65 = scmp.ne.s32.totalorder %s57, %s60
      %p66 = scmp.eq.s32.totalorder %s21, 0
      %p67 = por %p65, %p66
      %p68 = scmp.ne.s32.totalorder %s57, %s60
      %p69 = scmp.eq.s32.totalorder %s26, 1
      %p70 = por %p68, %p69
      %p71 = scmp.ne.s32.totalorder %s60, %s61
      %p72 = scmp.eq.s32.totalorder %s26, 0
      %p73 = por %p71, %p72
      %p74 = scmp.ne.s32.totalorder %s60, %s61
      %p75 = scmp.eq.s32.totalorder %s27, 1
      %p76 = por %p74, %p75
      %p78 = scmp.ne.s32.totalorder %s61, %s77
      %p79 = scmp.eq.s32.totalorder %s27, 0
      %p80 = por %p78, %p79
      %s82 = sadd.s32 %s81, 1
      %p85 = scmp.eq.s32.totalorder %s21, 1
      %p86 = scmp.ne.s32.totalorder %s81, %s83
      %p87 = scmp.eq.s32.totalorder %s21, 0
      %p88 = por %p86, %p87
      %p89 = scmp.ne.s32.totalorder %s81, %s83
      %p90 = scmp.eq.s32.totalorder %s26, 1
      %p91 = por %p89, %p90
      %p92 = scmp.ne.s32.totalorder %s83, %s84
      %p93 = scmp.eq.s32.totalorder %s26, 0
      %p94 = por %p92, %p93
      %p95 = scmp.ne.s32.totalorder %s83, %s84
      %p96 = scmp.eq.s32.totalorder %s27, 1
      %p97 = por %p95, %p96
      %p99 = scmp.ne.s32.totalorder %s84, %s98
      %p100 = scmp.eq.s32.totalorder %s27, 0
      %p101 = por %p99, %p100
      %s103 = sadd.s32 %s102, 1
      %p106 = scmp.eq.s32.totalorder %s21, 1
      %p107 = scmp.ne.s32.totalorder %s102, %s104
      %p108 = scmp.eq.s32.totalorder %s21, 0
      %p109 = por %p107, %p108
      %p110 = scmp.ne.s32.totalorder %s102, %s104
      %p111 = scmp.eq.s32.totalorder %s26, 1
      %p112 = por %p110, %p111
      %p113 = scmp.ne.s32.totalorder %s104, %s105
      %p114 = scmp.eq.s32.totalorder %s26, 0
      %p115 = por %p113, %p114
      %p116 = scmp.ne.s32.totalorder %s104, %s105
      %p117 = scmp.eq.s32.totalorder %s27, 1
      %p118 = por %p116, %p117
      %p120 = scmp.ne.s32.totalorder %s105, %s119
      %p121 = scmp.eq.s32.totalorder %s27, 0
      %p122 = por %p120, %p121
      %s124 = sadd.s32 %s123, 1
      %p127 = scmp.eq.s32.totalorder %s21, 1
      %p128 = scmp.ne.s32.totalorder %s123, %s125
      %p129 = scmp.eq.s32.totalorder %s21, 0
      %p130 = por %p128, %p129
      %p131 = scmp.ne.s32.totalorder %s123, %s125
      %p132 = scmp.eq.s32.totalorder %s26, 1
      %p133 = por %p131, %p132
      %p134 = scmp.ne.s32.totalorder %s125, %s126
      %p135 = scmp.eq.s32.totalorder %s26, 0
      %p136 = por %p134, %p135
      %p137 = scmp.ne.s32.totalorder %s125, %s126
      %p138 = scmp.eq.s32.totalorder %s27, 1
      %p139 = por %p137, %p138
      %p141 = scmp.ne.s32.totalorder %s126, %s140
      %p142 = scmp.eq.s32.totalorder %s27, 0
      %p143 = por %p141, %p142
      %s144 = ssub.s32 %s21, %s28
      %p145 = scmp.eq.s32.totalorder %s144, 0
      %s147 = sadd.s32 %s146, 1
      %s148 = scalar_select %p145, %s146, %s147
      %p151 = pneg %p145
      %p152 = scmp.eq.s32.totalorder %s21, 1
      %p153 = por %p151, %p152
      %p154 = scmp.ne.s32.totalorder %s146, %s149
      %p155 = scmp.eq.s32.totalorder %s21, 0
      %p156 = por %p154, %p155
      %p157 = scmp.ne.s32.totalorder %s146, %s149
      %p158 = scmp.eq.s32.totalorder %s26, 1
      %p159 = por %p157, %p158
      %p160 = scmp.ne.s32.totalorder %s149, %s150
      %p161 = scmp.eq.s32.totalorder %s26, 0
      %p162 = por %p160, %p161
      %p163 = scmp.ne.s32.totalorder %s149, %s150
      %p164 = scmp.eq.s32.totalorder %s27, 1
      %p165 = por %p163, %p164
      %p167 = scmp.ne.s32.totalorder %s150, %s166
      %p168 = scmp.eq.s32.totalorder %s27, 0
      %p169 = por %p167, %p168
      %s170 = ssub.s32 %s21, %s28
      %p171 = scmp.eq.s32.totalorder %s170, 0
      %s173 = sadd.s32 %s172, 1
      %s174 = scalar_select %p171, %s172, %s173
      %p177 = pneg %p171
      %p178 = scmp.eq.s32.totalorder %s21, 1
      %p179 = por %p177, %p178
      %p180 = scmp.ne.s32.totalorder %s172, %s175
      %p181 = scmp.eq.s32.totalorder %s21, 0
      %p182 = por %p180, %p181
      %p183 = scmp.ne.s32.totalorder %s172, %s175
      %p184 = scmp.eq.s32.totalorder %s26, 1
      %p185 = por %p183, %p184
      %p186 = scmp.ne.s32.totalorder %s175, %s176
      %p187 = scmp.eq.s32.totalorder %s26, 0
      %p188 = por %p186, %p187
      %p189 = scmp.ne.s32.totalorder %s175, %s176
      %p190 = scmp.eq.s32.totalorder %s27, 1
      %p191 = por %p189, %p190
      %p193 = scmp.ne.s32.totalorder %s176, %s192
      %p194 = scmp.eq.s32.totalorder %s27, 0
      %p195 = por %p193, %p194
      %p196 = scmp.le.s32.totalorder 1, %s21
      %p197 = scmp.lt.s32.totalorder %s21, 3
      %p198 = pnand %p196, %p197
      %p199 = pneg %p198
      // Predicated region
      $region9: #{tpu_custom_call.1} parent=5 // pred_check
        _
      $region10: #{tpu_custom_call.1} parent=5 // pred_check_branch
        %201 = sbr.rel (%p198) target = $region12
      $region11: #{tpu_custom_call.1} parent=5 // pred_region
        %s202 = ssub.s32 %s21, 1
        // Predicated region
        $region13: #{tpu_custom_call.1} parent=11 // pred_check
          %p203 = pneg %p94
        $region14: #{tpu_custom_call.1} parent=11 // pred_check_branch
          %205 = sbr.rel (%p203) target = $region16
        $region15: #{tpu_custom_call.1} parent=11 // pred_region
          %s207 = ssub.s32 2048, 2048
          %208 = vsyncadd [#allocation3], %s207
          %s209 = sshll.u32 [#allocation2], 4
          %s210 = int_to_ptr.vmem [resolvable:$true] %s209
          %215 = dma.hbm_to_vmem [thread:$0]  %s2, 2048, %s210, [#allocation3], 128, 128, 8
        $region16: #{tpu_custom_call.1} parent=11 // pred_fallthru
          _
        // Predicated region
        $region17: #{tpu_custom_call.1} parent=11 // pred_check
          %p216 = pneg %p115
        $region18: #{tpu_custom_call.1} parent=11 // pred_check_branch
          %218 = sbr.rel (%p216) target = $region20
        $region19: #{tpu_custom_call.1} parent=11 // pred_region
          _
        $region20: #{tpu_custom_call.1} parent=11 // pred_fallthru
          _
        // Predicated region
        $region21: #{tpu_custom_call.1} parent=11 // pred_check
          %p219 = pneg %p136
        $region22: #{tpu_custom_call.1} parent=11 // pred_check_branch
          %221 = sbr.rel (%p219) target = $region24
        $region23: #{tpu_custom_call.1} parent=11 // pred_region
          %s223 = ssub.s32 2048, 2048
          %224 = vsyncadd [#allocation6], %s223
          %s225 = sshll.u32 [#allocation5], 4
          %s226 = int_to_ptr.vmem [resolvable:$true] %s225
          %231 = dma.hbm_to_vmem [thread:$0]  %s4, 2048, %s226, [#allocation6], 128, 128, 8
        $region24: #{tpu_custom_call.1} parent=11 // pred_fallthru
          _
      $region12: #{tpu_custom_call.1} parent=5 // pred_fallthru
        _
      %p232 = scmp.lt.s32.totalorder %s21, 2
      // Predicated region
      $region25: #{tpu_custom_call.1} parent=5 // pred_check
        %p233 = pneg %p232
      $region26: #{tpu_custom_call.1} parent=5 // pred_check_branch
        %235 = sbr.rel (%p233) target = $region28
      $region27: #{tpu_custom_call.1} parent=5 // pred_region
        // Predicated region
        $region29: #{tpu_custom_call.1} parent=27 // pred_check
          %p236 = pneg %p41
        $region30: #{tpu_custom_call.1} parent=27 // pred_check_branch
          %238 = sbr.rel (%p236) target = $region32
        $region31: #{tpu_custom_call.1} parent=27 // pred_region
          %s239 = smul.u32 16, %s21
          %p240 = scmp.lt.s32.totalorder %s239, 31
          %s241 = scalar_select %p240, %s239, 31
          %s242 = smul.addr %s241, 8
          %s243 = scalar_lea.vmem %s0, %s242
          %s244 = smul.u32 16, %s21
        $region32: #{tpu_custom_call.1} parent=27 // pred_fallthru
          _
        // Predicated region
        $region33: #{tpu_custom_call.1} parent=27 // pred_check
          %p245 = pneg %p67
        $region34: #{tpu_custom_call.1} parent=27 // pred_check_branch
          %247 = sbr.rel (%p245) target = $region36
        $region35: #{tpu_custom_call.1} parent=27 // pred_region
          %s248 = smul.u32 16, %s21
          %p249 = scmp.lt.s32.totalorder %s248, 31
          %s250 = scalar_select %p249, %s248, 31
          %s251 = smul.addr %s250, 8
          %s252 = scalar_lea.vmem %s1, %s251
          %s253 = smul.u32 16, %s21
        $region36: #{tpu_custom_call.1} parent=27 // pred_fallthru
          _
      $region28: #{tpu_custom_call.1} parent=5 // pred_fallthru
        _
      %p254 = scmp.le.s32.totalorder 1, %s21
      %p255 = scmp.lt.s32.totalorder %s21, 3
      %p256 = pnand %p254, %p255
      %p257 = pneg %p256
      // Predicated region
      $region37: #{tpu_custom_call.1} parent=5 // pred_check
        _
      $region38: #{tpu_custom_call.1} parent=5 // pred_check_branch
        %259 = sbr.rel (%p256) target = $region40
      $region39: #{tpu_custom_call.1} parent=5 // pred_region
        %s260 = ssub.s32 %s21, 1
        // Predicated region
        $region41: #{tpu_custom_call.1} parent=39 // pred_check
          %p261 = pneg %p94
        $region42: #{tpu_custom_call.1} parent=39 // pred_check_branch
          %263 = sbr.rel (%p261) target = $region44
        $region43: #{tpu_custom_call.1} parent=39 // pred_region
          %264 = dma.done [#allocation3], 2048
        $region44: #{tpu_custom_call.1} parent=39 // pred_fallthru
          _
        // Predicated region
        $region45: #{tpu_custom_call.1} parent=39 // pred_check
          %p265 = pneg %p136
        $region46: #{tpu_custom_call.1} parent=39 // pred_check_branch
          %267 = sbr.rel (%p265) target = $region48
        $region47: #{tpu_custom_call.1} parent=39 // pred_region
          %268 = dma.done [#allocation6], 2048
        $region48: #{tpu_custom_call.1} parent=39 // pred_fallthru
          _
        %s269 = smul.u32 16, %s26
        %p270 = scmp.lt.s32.totalorder %s269, 31
        %s271 = scalar_select %p270, %s269, 31
        %s272 = smul.addr %s271, 8
        %s273 = scalar_lea.vmem %s0, %s272
        %p274 = pneg %p47
        %p275 = pneg %p44
        %s276 = smul.u32 16, %s26
        %p277 = scmp.lt.s32.totalorder %s276, 31
        %s278 = scalar_select %p277, %s276, 31
        %s279 = smul.addr %s278, 8
        %s280 = scalar_lea.vmem %s1, %s279
        %p281 = pneg %p73
        %p282 = pneg %p70
        %p283 = pneg %p94
        %p284 = pneg %p91
        %p285 = pneg %p115
        %p286 = pneg %p112
        %p287 = pneg %p136
        %p288 = pneg %p133
        %p289 = pneg %p162
        %p290 = pneg %p159
        %s291 = sand.u32 %s149, 1
        %s292 = scalar_lea.sflag [#allocation4], %s291
        %s293 = sand.u32 %s149, 1
        %s294 = smul.addr %s293, 128
        %s295 = scalar_lea.vmem [#allocation7], %s294
        %p296 = pneg %p188
        %p297 = pneg %p185
        %s298 = sand.u32 %s175, 1
        %s299 = scalar_lea.sflag [#allocation9], %s298
        %s300 = sand.u32 %s175, 1
        %s301 = smul.addr %s300, 128
        %s302 = scalar_lea.vmem [#allocation8], %s301
        %s303 = smul.u32 16, %s26
        %p304 = scmp.lt.s32.totalorder %s303, 31
        %s305 = scalar_select %p304, %s303, 31
        %s306 = smul.addr %s305, 8
        %s307 = scalar_lea.vmem %s0, %s306
        %s308 = smul.u32 16, %s26
        %s309 = smul.u32 16, %s26
        %p310 = scmp.lt.s32.totalorder %s309, 31
        %s311 = scalar_select %p310, %s309, 31
        %s312 = smul.addr %s311, 8
        %s313 = scalar_lea.vmem %s1, %s312
        %s314 = smul.u32 16, %s26
        %s315 = smul.u32 16, %s26
        %s316 = smul.u32 16, %s26
        %v317 = vld [vmem:[%s307] sm:$0xff]
        %v318 = vld [vmem:[%s307 + $0x8] sm:$0xff]
        %v319 = vld [vmem:[%s307 + $0x10] sm:$0xff]
        %v320 = vld [vmem:[%s307 + $0x18] sm:$0xff]
        %v321 = vld [vmem:[%s307 + $0x20] sm:$0xff]
        %v322 = vld [vmem:[%s307 + $0x28] sm:$0xff]
        %v323 = vld [vmem:[%s307 + $0x30] sm:$0xff]
        %v324 = vld [vmem:[%s307 + $0x38] sm:$0xff]
        %v325 = vld [vmem:[%s307 + $0x40] sm:$0xff]
        %v326 = vld [vmem:[%s307 + $0x48] sm:$0xff]
        %v327 = vld [vmem:[%s307 + $0x50] sm:$0xff]
        %v328 = vld [vmem:[%s307 + $0x58] sm:$0xff]
        %v329 = vld [vmem:[%s307 + $0x60] sm:$0xff]
        %v330 = vld [vmem:[%s307 + $0x68] sm:$0xff]
        %v331 = vld [vmem:[%s307 + $0x70] sm:$0xff]
        %v332 = vld [vmem:[%s307 + $0x78] sm:$0xff]
        %v333 = vld [vmem:[#allocation2] sm:$0xff]
        %v334 = vld [vmem:[#allocation2 + $0x8] sm:$0xff]
        %v335 = vld [vmem:[#allocation2 + $0x10] sm:$0xff]
        %v336 = vld [vmem:[#allocation2 + $0x18] sm:$0xff]
        %v337 = vld [vmem:[#allocation2 + $0x20] sm:$0xff]
        %v338 = vld [vmem:[#allocation2 + $0x28] sm:$0xff]
        %v339 = vld [vmem:[#allocation2 + $0x30] sm:$0xff]
        %v340 = vld [vmem:[#allocation2 + $0x38] sm:$0xff]
        %v341 = vld [vmem:[#allocation2 + $0x40] sm:$0xff]
        %v342 = vld [vmem:[#allocation2 + $0x48] sm:$0xff]
        %v343 = vld [vmem:[#allocation2 + $0x50] sm:$0xff]
        %v344 = vld [vmem:[#allocation2 + $0x58] sm:$0xff]
        %v345 = vld [vmem:[#allocation2 + $0x60] sm:$0xff]
        %v346 = vld [vmem:[#allocation2 + $0x68] sm:$0xff]
        %v347 = vld [vmem:[#allocation2 + $0x70] sm:$0xff]
        %v348 = vld [vmem:[#allocation2 + $0x78] sm:$0xff]
        %v349 = vld [vmem:[%s3] sm:$0x1]
        %v351 = vlaneseq
        %v352 = vshrl.u32 %v351, 7
        %v353 = vsub.s32 0, %v352
        %v354 = vrot.slane %v349, %v353
        %356 = vmatprep.subr.mxu0 0.0
        %357 = vmatpush1.msra.mxu0 %v333
        %358 = vmatprep.subr.mxu0 0.0
        %359 = vmatpush1.msra.mxu0 %v334
        %360 = vmatprep.subr.mxu0 0.0
        %361 = vmatpush1.msra.mxu0 %v335
        %362 = vmatprep.subr.mxu0 0.0
        %363 = vmatpush1.msra.mxu0 %v336
        %364 = vmatprep.subr.mxu0 0.0
        %365 = vmatpush1.msra.mxu0 %v337
        %366 = vmatprep.subr.mxu0 0.0
        %367 = vmatpush1.msra.mxu0 %v338
        %368 = vmatprep.subr.mxu0 0.0
        %369 = vmatpush1.msra.mxu0 %v339
        %370 = vmatprep.subr.mxu0 0.0
        %371 = vmatpush1.msra.mxu0 %v340
        %372 = vmatprep.subr.mxu0 0.0
        %373 = vmatpush1.msra.mxu0 %v341
        %374 = vmatprep.subr.mxu0 0.0
        %375 = vmatpush1.msra.mxu0 %v342
        %376 = vmatprep.subr.mxu0 0.0
        %377 = vmatpush1.msra.mxu0 %v343
        %378 = vmatprep.subr.mxu0 0.0
        %379 = vmatpush1.msra.mxu0 %v344
        %380 = vmatprep.subr.mxu0 0.0
        %381 = vmatpush1.msra.mxu0 %v345
        %382 = vmatprep.subr.mxu0 0.0
        %383 = vmatpush1.msra.mxu0 %v346
        %384 = vmatprep.subr.mxu0 0.0
        %385 = vmatpush1.msra.mxu0 %v347
        %386 = vmatprep.subr.mxu0 0.0
        %387 = vmatpush1.msra.mxu0 %v348
        %388 = vmatprep.subr.mxu0 0.0
        %389 = vmatpush1.msra.mxu0 0.0
        %390 = vmatprep.subr.mxu0 0.0
        %391 = vmatpush1.msra.mxu0 0.0
        %392 = vmatprep.subr.mxu0 0.0
        %393 = vmatpush1.msra.mxu0 0.0
        %394 = vmatprep.subr.mxu0 0.0
        %395 = vmatpush1.msra.mxu0 0.0
        %396 = vmatprep.subr.mxu0 0.0
        %397 = vmatpush1.msra.mxu0 0.0
        %398 = vmatprep.subr.mxu0 0.0
        %399 = vmatpush1.msra.mxu0 0.0
        %400 = vmatprep.subr.mxu0 0.0
        %401 = vmatpush1.msra.mxu0 0.0
        %402 = vmatprep.subr.mxu0 0.0
        %403 = vmatpush1.msra.mxu0 0.0
        %404 = vmatprep.subr.mxu0 0.0
        %405 = vmatpush1.msra.mxu0 0.0
        %406 = vmatprep.subr.mxu0 0.0
        %407 = vmatpush1.msra.mxu0 0.0
        %408 = vmatprep.subr.mxu0 0.0
        %409 = vmatpush1.msra.mxu0 0.0
        %410 = vmatprep.subr.mxu0 0.0
        %411 = vmatpush1.msra.mxu0 0.0
        %412 = vmatprep.subr.mxu0 0.0
        %413 = vmatpush1.msra.mxu0 0.0
        %414 = vmatprep.subr.mxu0 0.0
        %415 = vmatpush1.msra.mxu0 0.0
        %416 = vmatprep.subr.mxu0 0.0
        %417 = vmatpush1.msra.mxu0 0.0
        %418 = vmatprep.subr.mxu0 0.0
        %419 = vmatpush1.msra.mxu0 0.0
        %420 = vmatprep.mubr.f32.mxu0 0.0
        %421 = vmatmul.mubr.f32.gmra.mrb[0].mxu0 %v317
        %v422 = vpop.f32.mrb[0].mxu0
        %v423 = vadd.f32 %v354, %v422
        %v424 = vpop.f32.mrb[0].mxu0
        %425 = vmatprep.mubr.f32.mxu0 0.0
        %426 = vmatmul.mubr.f32.gmra.mrb[0].mxu0 %v318
        %v427 = vpop.f32.mrb[0].mxu0
        %v428 = vadd.f32 %v354, %v427
        %v429 = vpop.f32.mrb[0].mxu0
        %430 = vmatprep.mubr.f32.mxu0 0.0
        %431 = vmatmul.mubr.f32.gmra.mrb[0].mxu0 %v319
        %v432 = vpop.f32.mrb[0].mxu0
        %v433 = vadd.f32 %v354, %v432
        %v434 = vpop.f32.mrb[0].mxu0
        %435 = vmatprep.mubr.f32.mxu0 0.0
        %436 = vmatmul.mubr.f32.gmra.mrb[0].mxu0 %v320
        %v437 = vpop.f32.mrb[0].mxu0
        %v438 = vadd.f32 %v354, %v437
        %v439 = vpop.f32.mrb[0].mxu0
        %440 = vmatprep.mubr.f32.mxu0 0.0
        %441 = vmatmul.mubr.f32.gmra.mrb[0].mxu0 %v321
        %v442 = vpop.f32.mrb[0].mxu0
        %v443 = vadd.f32 %v354, %v442
        %v444 = vpop.f32.mrb[0].mxu0
        %445 = vmatprep.mubr.f32.mxu0 0.0
        %446 = vmatmul.mubr.f32.gmra.mrb[0].mxu0 %v322
        %v447 = vpop.f32.mrb[0].mxu0
        %v448 = vadd.f32 %v354, %v447
        %v449 = vpop.f32.mrb[0].mxu0
        %450 = vmatprep.mubr.f32.mxu0 0.0
        %451 = vmatmul.mubr.f32.gmra.mrb[0].mxu0 %v323
        %v452 = vpop.f32.mrb[0].mxu0
        %v453 = vadd.f32 %v354, %v452
        %v454 = vpop.f32.mrb[0].mxu0
        %455 = vmatprep.mubr.f32.mxu0 0.0
        %456 = vmatmul.mubr.f32.gmra.mrb[0].mxu0 %v324
        %v457 = vpop.f32.mrb[0].mxu0
        %v458 = vadd.f32 %v354, %v457
        %v459 = vpop.f32.mrb[0].mxu0
        %460 = vmatprep.mubr.f32.mxu0 0.0
        %461 = vmatmul.mubr.f32.gmra.mrb[0].mxu0 %v325
        %v462 = vpop.f32.mrb[0].mxu0
        %v463 = vadd.f32 %v354, %v462
        %v464 = vpop.f32.mrb[0].mxu0
        %465 = vmatprep.mubr.f32.mxu0 0.0
        %466 = vmatmul.mubr.f32.gmra.mrb[0].mxu0 %v326
        %v467 = vpop.f32.mrb[0].mxu0
        %v468 = vadd.f32 %v354, %v467
        %v469 = vpop.f32.mrb[0].mxu0
        %470 = vmatprep.mubr.f32.mxu0 0.0
        %471 = vmatmul.mubr.f32.gmra.mrb[0].mxu0 %v327
        %v472 = vpop.f32.mrb[0].mxu0
        %v473 = vadd.f32 %v354, %v472
        %v474 = vpop.f32.mrb[0].mxu0
        %475 = vmatprep.mubr.f32.mxu0 0.0
        %476 = vmatmul.mubr.f32.gmra.mrb[0].mxu0 %v328
        %v477 = vpop.f32.mrb[0].mxu0
        %v478 = vadd.f32 %v354, %v477
        %v479 = vpop.f32.mrb[0].mxu0
        %480 = vmatprep.mubr.f32.mxu0 0.0
        %481 = vmatmul.mubr.f32.gmra.mrb[0].mxu0 %v329
        %v482 = vpop.f32.mrb[0].mxu0
        %v483 = vadd.f32 %v354, %v482
        %v484 = vpop.f32.mrb[0].mxu0
        %485 = vmatprep.mubr.f32.mxu0 0.0
        %486 = vmatmul.mubr.f32.gmra.mrb[0].mxu0 %v330
        %v487 = vpop.f32.mrb[0].mxu0
        %v488 = vadd.f32 %v354, %v487
        %v489 = vpop.f32.mrb[0].mxu0
        %490 = vmatprep.mubr.f32.mxu0 0.0
        %491 = vmatmul.mubr.f32.gmra.mrb[0].mxu0 %v331
        %v492 = vpop.f32.mrb[0].mxu0
        %v493 = vadd.f32 %v354, %v492
        %v494 = vpop.f32.mrb[0].mxu0
        %495 = vmatprep.mubr.f32.mxu0 0.0
        %496 = vmatmul.mubr.f32.gmra.mrb[0].mxu0 %v332
        %v497 = vpop.f32.mrb[0].mxu0
        %v498 = vadd.f32 %v354, %v497
        %v499 = vpop.f32.mrb[0].mxu0
        %500 = vdwg.mxu0
        %501 = vst [vmem:[%s295] sm:$0xff] %v423
        %502 = vst [vmem:[%s295 + $0x8] sm:$0xff] %v428
        %503 = vst [vmem:[%s295 + $0x10] sm:$0xff] %v433
        %504 = vst [vmem:[%s295 + $0x18] sm:$0xff] %v438
        %505 = vst [vmem:[%s295 + $0x20] sm:$0xff] %v443
        %506 = vst [vmem:[%s295 + $0x28] sm:$0xff] %v448
        %507 = vst [vmem:[%s295 + $0x30] sm:$0xff] %v453
        %508 = vst [vmem:[%s295 + $0x38] sm:$0xff] %v458
        %509 = vst [vmem:[%s295 + $0x40] sm:$0xff] %v463
        %510 = vst [vmem:[%s295 + $0x48] sm:$0xff] %v468
        %511 = vst [vmem:[%s295 + $0x50] sm:$0xff] %v473
        %512 = vst [vmem:[%s295 + $0x58] sm:$0xff] %v478
        %513 = vst [vmem:[%s295 + $0x60] sm:$0xff] %v483
        %514 = vst [vmem:[%s295 + $0x68] sm:$0xff] %v488
        %515 = vst [vmem:[%s295 + $0x70] sm:$0xff] %v493
        %516 = vst [vmem:[%s295 + $0x78] sm:$0xff] %v498
        %v517 = vld [vmem:[%s313] sm:$0xff]
        %v518 = vld [vmem:[%s313 + $0x8] sm:$0xff]
        %v519 = vld [vmem:[%s313 + $0x10] sm:$0xff]
        %v520 = vld [vmem:[%s313 + $0x18] sm:$0xff]
        %v521 = vld [vmem:[%s313 + $0x20] sm:$0xff]
        %v522 = vld [vmem:[%s313 + $0x28] sm:$0xff]
        %v523 = vld [vmem:[%s313 + $0x30] sm:$0xff]
        %v524 = vld [vmem:[%s313 + $0x38] sm:$0xff]
        %v525 = vld [vmem:[%s313 + $0x40] sm:$0xff]
        %v526 = vld [vmem:[%s313 + $0x48] sm:$0xff]
        %v527 = vld [vmem:[%s313 + $0x50] sm:$0xff]
        %v528 = vld [vmem:[%s313 + $0x58] sm:$0xff]
        %v529 = vld [vmem:[%s313 + $0x60] sm:$0xff]
        %v530 = vld [vmem:[%s313 + $0x68] sm:$0xff]
        %v531 = vld [vmem:[%s313 + $0x70] sm:$0xff]
        %v532 = vld [vmem:[%s313 + $0x78] sm:$0xff]
        %534 = vset.pattern.permute.xlu0 0
        %535 = vperm.xlu0 %534, %v517
        %v536 = vpop.permute.xlu0 %535
        %539 = vset.pattern.permute.xlu0 0
        %540 = vperm.xlu0 %539, %v518
        %v541 = vpop.permute.xlu0 %540
        %544 = vset.pattern.permute.xlu0 0
        %545 = vperm.xlu0 %544, %v519
        %v546 = vpop.permute.xlu0 %545
        %549 = vset.pattern.permute.xlu0 0
        %550 = vperm.xlu0 %549, %v520
        %v551 = vpop.permute.xlu0 %550
        %554 = vset.pattern.permute.xlu0 0
        %555 = vperm.xlu0 %554, %v521
        %v556 = vpop.permute.xlu0 %555
        %559 = vset.pattern.permute.xlu0 0
        %560 = vperm.xlu0 %559, %v522
        %v561 = vpop.permute.xlu0 %560
        %564 = vset.pattern.permute.xlu0 0
        %565 = vperm.xlu0 %564, %v523
        %v566 = vpop.permute.xlu0 %565
        %569 = vset.pattern.permute.xlu0 0
        %570 = vperm.xlu0 %569, %v524
        %v571 = vpop.permute.xlu0 %570
        %574 = vset.pattern.permute.xlu0 0
        %575 = vperm.xlu0 %574, %v525
        %v576 = vpop.permute.xlu0 %575
        %579 = vset.pattern.permute.xlu0 0
        %580 = vperm.xlu0 %579, %v526
        %v581 = vpop.permute.xlu0 %580
        %584 = vset.pattern.permute.xlu0 0
        %585 = vperm.xlu0 %584, %v527
        %v586 = vpop.permute.xlu0 %585
        %589 = vset.pattern.permute.xlu0 0
        %590 = vperm.xlu0 %589, %v528
        %v591 = vpop.permute.xlu0 %590
        %594 = vset.pattern.permute.xlu0 0
        %595 = vperm.xlu0 %594, %v529
        %v596 = vpop.permute.xlu0 %595
        %599 = vset.pattern.permute.xlu0 0
        %600 = vperm.xlu0 %599, %v530
        %v601 = vpop.permute.xlu0 %600
        %604 = vset.pattern.permute.xlu0 0
        %605 = vperm.xlu0 %604, %v531
        %v606 = vpop.permute.xlu0 %605
        %609 = vset.pattern.permute.xlu0 0
        %610 = vperm.xlu0 %609, %v532
        %v611 = vpop.permute.xlu0 %610
        %v613 = vmul.f32 %v536, %v423
        %v614 = vmul.f32 %v541, %v428
        %v615 = vmul.f32 %v546, %v433
        %v616 = vmul.f32 %v551, %v438
        %v617 = vmul.f32 %v556, %v443
        %v618 = vmul.f32 %v561, %v448
        %v619 = vmul.f32 %v566, %v453
        %v620 = vmul.f32 %v571, %v458
        %v621 = vmul.f32 %v576, %v463
        %v622 = vmul.f32 %v581, %v468
        %v623 = vmul.f32 %v586, %v473
        %v624 = vmul.f32 %v591, %v478
        %v625 = vmul.f32 %v596, %v483
        %v626 = vmul.f32 %v601, %v488
        %v627 = vmul.f32 %v606, %v493
        %v628 = vmul.f32 %v611, %v498
        %v629 = vld [vmem:[#allocation5] sm:$0xff]
        %v630 = vld [vmem:[#allocation5 + $0x8] sm:$0xff]
        %v631 = vld [vmem:[#allocation5 + $0x10] sm:$0xff]
        %v632 = vld [vmem:[#allocation5 + $0x18] sm:$0xff]
        %v633 = vld [vmem:[#allocation5 + $0x20] sm:$0xff]
        %v634 = vld [vmem:[#allocation5 + $0x28] sm:$0xff]
        %v635 = vld [vmem:[#allocation5 + $0x30] sm:$0xff]
        %v636 = vld [vmem:[#allocation5 + $0x38] sm:$0xff]
        %v637 = vld [vmem:[#allocation5 + $0x40] sm:$0xff]
        %v638 = vld [vmem:[#allocation5 + $0x48] sm:$0xff]
        %v639 = vld [vmem:[#allocation5 + $0x50] sm:$0xff]
        %v640 = vld [vmem:[#allocation5 + $0x58] sm:$0xff]
        %v641 = vld [vmem:[#allocation5 + $0x60] sm:$0xff]
        %v642 = vld [vmem:[#allocation5 + $0x68] sm:$0xff]
        %v643 = vld [vmem:[#allocation5 + $0x70] sm:$0xff]
        %v644 = vld [vmem:[#allocation5 + $0x78] sm:$0xff]
        %645 = vmatprep.subr.mxu0 0.0
        %646 = vmatpush1.msra.mxu0 %v629
        %647 = vmatprep.subr.mxu0 0.0
        %648 = vmatpush1.msra.mxu0 %v630
        %649 = vmatprep.subr.mxu0 0.0
        %650 = vmatpush1.msra.mxu0 %v631
        %651 = vmatprep.subr.mxu0 0.0
        %652 = vmatpush1.msra.mxu0 %v632
        %653 = vmatprep.subr.mxu0 0.0
        %654 = vmatpush1.msra.mxu0 %v633
        %655 = vmatprep.subr.mxu0 0.0
        %656 = vmatpush1.msra.mxu0 %v634
        %657 = vmatprep.subr.mxu0 0.0
        %658 = vmatpush1.msra.mxu0 %v635
        %659 = vmatprep.subr.mxu0 0.0
        %660 = vmatpush1.msra.mxu0 %v636
        %661 = vmatprep.subr.mxu0 0.0
        %662 = vmatpush1.msra.mxu0 %v637
        %663 = vmatprep.subr.mxu0 0.0
        %664 = vmatpush1.msra.mxu0 %v638
        %665 = vmatprep.subr.mxu0 0.0
        %666 = vmatpush1.msra.mxu0 %v639
        %667 = vmatprep.subr.mxu0 0.0
        %668 = vmatpush1.msra.mxu0 %v640
        %669 = vmatprep.subr.mxu0 0.0
        %670 = vmatpush1.msra.mxu0 %v641
        %671 = vmatprep.subr.mxu0 0.0
        %672 = vmatpush1.msra.mxu0 %v642
        %673 = vmatprep.subr.mxu0 0.0
        %674 = vmatpush1.msra.mxu0 %v643
        %675 = vmatprep.subr.mxu0 0.0
        %676 = vmatpush1.msra.mxu0 %v644
        %677 = vmatprep.subr.mxu0 0.0
        %678 = vmatpush1.msra.mxu0 0.0
        %679 = vmatprep.subr.mxu0 0.0
        %680 = vmatpush1.msra.mxu0 0.0
        %681 = vmatprep.subr.mxu0 0.0
        %682 = vmatpush1.msra.mxu0 0.0
        %683 = vmatprep.subr.mxu0 0.0
        %684 = vmatpush1.msra.mxu0 0.0
        %685 = vmatprep.subr.mxu0 0.0
        %686 = vmatpush1.msra.mxu0 0.0
        %687 = vmatprep.subr.mxu0 0.0
        %688 = vmatpush1.msra.mxu0 0.0
        %689 = vmatprep.subr.mxu0 0.0
        %690 = vmatpush1.msra.mxu0 0.0
        %691 = vmatprep.subr.mxu0 0.0
        %692 = vmatpush1.msra.mxu0 0.0
        %693 = vmatprep.subr.mxu0 0.0
        %694 = vmatpush1.msra.mxu0 0.0
        %695 = vmatprep.subr.mxu0 0.0
        %696 = vmatpush1.msra.mxu0 0.0
        %697 = vmatprep.subr.mxu0 0.0
        %698 = vmatpush1.msra.mxu0 0.0
        %699 = vmatprep.subr.mxu0 0.0
        %700 = vmatpush1.msra.mxu0 0.0
        %701 = vmatprep.subr.mxu0 0.0
        %702 = vmatpush1.msra.mxu0 0.0
        %703 = vmatprep.subr.mxu0 0.0
        %704 = vmatpush1.msra.mxu0 0.0
        %705 = vmatprep.subr.mxu0 0.0
        %706 = vmatpush1.msra.mxu0 0.0
        %707 = vmatprep.subr.mxu0 0.0
        %708 = vmatpush1.msra.mxu0 0.0
        %709 = vmatprep.mubr.f32.mxu0 0.0
        %710 = vmatmul.mubr.f32.gmra.mrb[0].mxu0 %v613
        %v711 = vpop.f32.mrb[0].mxu0
        %v712 = vadd.f32 0.0, %v711
        %v713 = vpop.f32.mrb[0].mxu0
        %714 = vmatprep.mubr.f32.mxu0 0.0
        %715 = vmatmul.mubr.f32.gmra.mrb[0].mxu0 %v614
        %v716 = vpop.f32.mrb[0].mxu0
        %v717 = vadd.f32 0.0, %v716
        %v718 = vpop.f32.mrb[0].mxu0
        %719 = vmatprep.mubr.f32.mxu0 0.0
        %720 = vmatmul.mubr.f32.gmra.mrb[0].mxu0 %v615
        %v721 = vpop.f32.mrb[0].mxu0
        %v722 = vadd.f32 0.0, %v721
        %v723 = vpop.f32.mrb[0].mxu0
        %724 = vmatprep.mubr.f32.mxu0 0.0
        %725 = vmatmul.mubr.f32.gmra.mrb[0].mxu0 %v616
        %v726 = vpop.f32.mrb[0].mxu0
        %v727 = vadd.f32 0.0, %v726
        %v728 = vpop.f32.mrb[0].mxu0
        %729 = vmatprep.mubr.f32.mxu0 0.0
        %730 = vmatmul.mubr.f32.gmra.mrb[0].mxu0 %v617
        %v731 = vpop.f32.mrb[0].mxu0
        %v732 = vadd.f32 0.0, %v731
        %v733 = vpop.f32.mrb[0].mxu0
        %734 = vmatprep.mubr.f32.mxu0 0.0
        %735 = vmatmul.mubr.f32.gmra.mrb[0].mxu0 %v618
        %v736 = vpop.f32.mrb[0].mxu0
        %v737 = vadd.f32 0.0, %v736
        %v738 = vpop.f32.mrb[0].mxu0
        %739 = vmatprep.mubr.f32.mxu0 0.0
        %740 = vmatmul.mubr.f32.gmra.mrb[0].mxu0 %v619
        %v741 = vpop.f32.mrb[0].mxu0
        %v742 = vadd.f32 0.0, %v741
        %v743 = vpop.f32.mrb[0].mxu0
        %744 = vmatprep.mubr.f32.mxu0 0.0
        %745 = vmatmul.mubr.f32.gmra.mrb[0].mxu0 %v620
        %v746 = vpop.f32.mrb[0].mxu0
        %v747 = vadd.f32 0.0, %v746
        %v748 = vpop.f32.mrb[0].mxu0
        %749 = vmatprep.mubr.f32.mxu0 0.0
        %750 = vmatmul.mubr.f32.gmra.mrb[0].mxu0 %v621
        %v751 = vpop.f32.mrb[0].mxu0
        %v752 = vadd.f32 0.0, %v751
        %v753 = vpop.f32.mrb[0].mxu0
        %754 = vmatprep.mubr.f32.mxu0 0.0
        %755 = vmatmul.mubr.f32.gmra.mrb[0].mxu0 %v622
        %v756 = vpop.f32.mrb[0].mxu0
        %v757 = vadd.f32 0.0, %v756
        %v758 = vpop.f32.mrb[0].mxu0
        %759 = vmatprep.mubr.f32.mxu0 0.0
        %760 = vmatmul.mubr.f32.gmra.mrb[0].mxu0 %v623
        %v761 = vpop.f32.mrb[0].mxu0
        %v762 = vadd.f32 0.0, %v761
        %v763 = vpop.f32.mrb[0].mxu0
        %764 = vmatprep.mubr.f32.mxu0 0.0
        %765 = vmatmul.mubr.f32.gmra.mrb[0].mxu0 %v624
        %v766 = vpop.f32.mrb[0].mxu0
        %v767 = vadd.f32 0.0, %v766
        %v768 = vpop.f32.mrb[0].mxu0
        %769 = vmatprep.mubr.f32.mxu0 0.0
        %770 = vmatmul.mubr.f32.gmra.mrb[0].mxu0 %v625
        %v771 = vpop.f32.mrb[0].mxu0
        %v772 = vadd.f32 0.0, %v771
        %v773 = vpop.f32.mrb[0].mxu0
        %774 = vmatprep.mubr.f32.mxu0 0.0
        %775 = vmatmul.mubr.f32.gmra.mrb[0].mxu0 %v626
        %v776 = vpop.f32.mrb[0].mxu0
        %v777 = vadd.f32 0.0, %v776
        %v778 = vpop.f32.mrb[0].mxu0
        %779 = vmatprep.mubr.f32.mxu0 0.0
        %780 = vmatmul.mubr.f32.gmra.mrb[0].mxu0 %v627
        %v781 = vpop.f32.mrb[0].mxu0
        %v782 = vadd.f32 0.0, %v781
        %v783 = vpop.f32.mrb[0].mxu0
        %784 = vmatprep.mubr.f32.mxu0 0.0
        %785 = vmatmul.mubr.f32.gmra.mrb[0].mxu0 %v628
        %v786 = vpop.f32.mrb[0].mxu0
        %v787 = vadd.f32 0.0, %v786
        %v788 = vpop.f32.mrb[0].mxu0
        %789 = vdwg.mxu0
        %790 = vst [vmem:[%s302] sm:$0xff] %v712
        %791 = vst [vmem:[%s302 + $0x8] sm:$0xff] %v717
        %792 = vst [vmem:[%s302 + $0x10] sm:$0xff] %v722
        %793 = vst [vmem:[%s302 + $0x18] sm:$0xff] %v727
        %794 = vst [vmem:[%s302 + $0x20] sm:$0xff] %v732
        %795 = vst [vmem:[%s302 + $0x28] sm:$0xff] %v737
        %796 = vst [vmem:[%s302 + $0x30] sm:$0xff] %v742
        %797 = vst [vmem:[%s302 + $0x38] sm:$0xff] %v747
        %798 = vst [vmem:[%s302 + $0x40] sm:$0xff] %v752
        %799 = vst [vmem:[%s302 + $0x48] sm:$0xff] %v757
        %800 = vst [vmem:[%s302 + $0x50] sm:$0xff] %v762
        %801 = vst [vmem:[%s302 + $0x58] sm:$0xff] %v767
        %802 = vst [vmem:[%s302 + $0x60] sm:$0xff] %v772
        %803 = vst [vmem:[%s302 + $0x68] sm:$0xff] %v777
        %804 = vst [vmem:[%s302 + $0x70] sm:$0xff] %v782
        %805 = vst [vmem:[%s302 + $0x78] sm:$0xff] %v787
        %s806 = sand.u32 %s149, 1
        %s807 = scalar_lea.sflag [#allocation4], %s806
        %s808 = sand.u32 %s149, 1
        %s809 = smul.addr %s808, 128
        %s810 = scalar_lea.vmem [#allocation7], %s809
        %s811 = sand.u32 %s175, 1
        %s812 = scalar_lea.sflag [#allocation9], %s811
        %s813 = sand.u32 %s175, 1
        %s814 = smul.addr %s813, 128
        %s815 = scalar_lea.vmem [#allocation8], %s814
        // Predicated region
        $region49: #{tpu_custom_call.1} parent=39 // pred_check
          %p816 = pneg %p159
        $region50: #{tpu_custom_call.1} parent=39 // pred_check_branch
          %818 = sbr.rel (%p816) target = $region52
        $region51: #{tpu_custom_call.1} parent=39 // pred_region
          %s819 = smul.u32 16, %s26
          %s821 = ssub.s32 2048, 2048
          %822 = vsyncadd %s807, %s821
          %s823 = smul.addr %s819, 128
          %s824 = scalar_lea.hbm %s5, %s823
          %s825 = sshll.u32 %s810, 4
          %s826 = int_to_ptr.vmem [resolvable:$true] %s825
          %831 = dma.vmem_to_hbm [thread:$0]  %s826, 2048, %s824, %s807, 128, 128, 8
        $region52: #{tpu_custom_call.1} parent=39 // pred_fallthru
          _
        // Predicated region
        $region53: #{tpu_custom_call.1} parent=39 // pred_check
          %p832 = pneg %p185
        $region54: #{tpu_custom_call.1} parent=39 // pred_check_branch
          %834 = sbr.rel (%p832) target = $region56
        $region55: #{tpu_custom_call.1} parent=39 // pred_region
          %s835 = smul.u32 16, %s26
          %s837 = ssub.s32 2048, 2048
          %838 = vsyncadd %s812, %s837
          %s839 = smul.addr %s835, 128
          %s840 = scalar_lea.hbm %s6, %s839
          %s841 = sshll.u32 %s815, 4
          %s842 = int_to_ptr.vmem [resolvable:$true] %s841
          %847 = dma.vmem_to_hbm [thread:$0]  %s842, 2048, %s840, %s812, 128, 128, 8
        $region56: #{tpu_custom_call.1} parent=39 // pred_fallthru
          _
      $region40: #{tpu_custom_call.1} parent=5 // pred_fallthru
        _
      %p848 = scmp.le.s32.totalorder 2, %s21
      // Predicated region
      $region57: #{tpu_custom_call.1} parent=5 // pred_check
        %p849 = pneg %p848
      $region58: #{tpu_custom_call.1} parent=5 // pred_check_branch
        %851 = sbr.rel (%p849) target = $region60
      $region59: #{tpu_custom_call.1} parent=5 // pred_region
        %s852 = ssub.s32 %s21, 2
        // Predicated region
        $region61: #{tpu_custom_call.1} parent=59 // pred_check
          %p853 = pneg %p165
        $region62: #{tpu_custom_call.1} parent=59 // pred_check_branch
          %855 = sbr.rel (%p853) target = $region64
        $region63: #{tpu_custom_call.1} parent=59 // pred_region
          %s856 = sand.u32 %s150, 1
          %s857 = scalar_lea.sflag [#allocation4], %s856
          %s858 = sand.u32 %s150, 1
          %s859 = smul.addr %s858, 128
          %s860 = scalar_lea.vmem [#allocation7], %s859
          %861 = dma.done %s857, 2048
        $region64: #{tpu_custom_call.1} parent=59 // pred_fallthru
          _
        // Predicated region
        $region65: #{tpu_custom_call.1} parent=59 // pred_check
          %p862 = pneg %p191
        $region66: #{tpu_custom_call.1} parent=59 // pred_check_branch
          %864 = sbr.rel (%p862) target = $region68
        $region67: #{tpu_custom_call.1} parent=59 // pred_region
          %s865 = sand.u32 %s176, 1
          %s866 = scalar_lea.sflag [#allocation9], %s865
          %s867 = sand.u32 %s176, 1
          %s868 = smul.addr %s867, 128
          %s869 = scalar_lea.vmem [#allocation8], %s868
          %870 = dma.done %s866, 2048
        $region68: #{tpu_custom_call.1} parent=59 // pred_fallthru
          _
      $region60: #{tpu_custom_call.1} parent=5 // pred_fallthru
        _
    $region6: #{tpu_custom_call.1} parent=1 // loop_footer
      %s25 = sadd.s32 1, %s21
    $region7: #{tpu_custom_call.1} parent=1 // loop_footer_branch
      %20 = sbr.rel target = $region3
    $region8: #{tpu_custom_call.1} parent=1 // loop_exit
      _
    %871 = vsyncpa [#allocation3], 1
    %s872 = scalar_lea.sflag [#allocation3], 1
    %873 = vsyncpa %s872, 1
    %874 = vsyncpa [#allocation6], 1
    %875 = vsyncpa [#allocation4], 1
    %s876 = scalar_lea.sflag [#allocation4], 1
    %877 = vsyncpa %s876, 1
    %878 = vsyncpa [#allocation9], 1
    %s879 = scalar_lea.sflag [#allocation9], 1
    %880 = vsyncpa %s879, 1

</llo_original>
